<compile_context>
chip_gen: v6e
topology: v6e:2x2x1
jax: 0.10.0
libtpu: 0.0.40
codegen_flags: <defaults>
</compile_context>

<pallas_src>
import jax
import jax.numpy as jnp
from jax.experimental import pallas as pl
from jax.experimental.pallas import tpu as pltpu

NEURON = 64
HIDDEN_PAD = 128   # lane-dense width for hidden layers and output head


def _round_up(x, m):
    return ((x + m - 1) // m) * m


def _param_actor_kernel(x_ref, w1_ref, w2_ref, w3_ref, b_ref, out_ref):
    # Matmuls in bf16 with f32 accumulation (fast MXU path); epilogue in f32.
    x = x_ref[...].astype(jnp.bfloat16)

    # Layer 1: Linear(state_size -> 128-padded) + ReLU
    h1 = jnp.dot(x, w1_ref[...], preferred_element_type=jnp.float32)
    h1 = jnp.maximum(h1 + b_ref[0:1, :], 0.0)

    # Layer 2: Linear(128 -> 128, zero-padded beyond 64) + ReLU
    h2 = jnp.dot(h1.astype(jnp.bfloat16), w2_ref[...],
                 preferred_element_type=jnp.float32)
    h2 = jnp.maximum(h2 + b_ref[1:2, :], 0.0)

    # Output head: Linear(128 -> 128, zero-padded beyond AP) + tanh
    o = jnp.dot(h2.astype(jnp.bfloat16), w3_ref[...],
                preferred_element_type=jnp.float32)
    out_ref[...] = jnp.tanh(o + b_ref[2:3, :])


def _pick_batch_tile(B, max_tile):
    """Choose a sublane-aligned batch tile that balances MXU fill vs padding."""
    if B <= max_tile:
        # Single grid step: pad only to the 8-row sublane granule.
        return _round_up(max(B, 1), 8)
    # Multi-step: pick the MXU-friendly tile that minimizes batch padding.
    candidates = (512, 384, 256)
    candidates = tuple(t for t in candidates if t <= max_tile) or (max_tile,)
    return min(candidates, key=lambda t: (_round_up(B, t) - B, -t))


def param_actor_forward(state, params, *, batch_tile=512):
    """state: [B, state_size] f32 -> action_params: [B, action_parameter_size] f32."""
    w1, b1, w2, b2, w3, b3 = params
    B, S = state.shape
    AP = w3.shape[1]
    H = HIDDEN_PAD

    bt = _pick_batch_tile(B, batch_tile)
    B_pad = _round_up(B, bt)
    if B_pad != B:
        state = jnp.pad(state, ((0, B_pad - B), (0, 0)))
    num_tiles = B_pad // bt
    # NOTE(v7x): if num_tiles >= 2 the "parallel" axis is sharded across both
    # TensorCores; for small batches a single step is fine.

    # Zero-pad weights to lane-dense 128-wide feature dims; cast to bf16.
    w1p = jnp.zeros((S, H), jnp.float32).at[:, :NEURON].set(w1).astype(jnp.bfloat16)
    w2p = jnp.zeros((H, H), jnp.float32).at[:NEURON, :NEURON].set(w2).astype(jnp.bfloat16)
    w3p = jnp.zeros((H, H), jnp.float32).at[:NEURON, :AP].set(w3).astype(jnp.bfloat16)
    # Consolidated biases: one small [3, 128] f32 operand (one DMA window).
    b_all = jnp.zeros((3, H), jnp.float32)
    b_all = b_all.at[0, :NEURON].set(b1)
    b_all = b_all.at[1, :NEURON].set(b2)
    b_all = b_all.at[2, :AP].set(b3)

    out_padded = pl.pallas_call(
        _param_actor_kernel,
        out_shape=jax.ShapeDtypeStruct((B_pad, H), jnp.float32),
        grid_spec=pl.GridSpec(
            grid=(num_tiles,),
            in_specs=[
                pl.BlockSpec((bt, S), lambda i: (i, 0)),   # state tile
                pl.BlockSpec((S, H), lambda i: (0, 0)),    # w1 (resident)
                pl.BlockSpec((H, H), lambda i: (0, 0)),    # w2 (resident)
                pl.BlockSpec((H, H), lambda i: (0, 0)),    # w3 (resident)
                pl.BlockSpec((3, H), lambda i: (0, 0)),    # biases (resident)
            ],
            out_specs=pl.BlockSpec((bt, H), lambda i: (i, 0)),  # lane-dense
        ),
        compiler_params=pltpu.CompilerParams(
            dimension_semantics=("parallel",)),
    )(state, w1p, w2p, w3p, b_all)

    # Strip batch padding and the lane padding of the output head.
    return out_padded[:B, :AP]


def init_param_actor(key, state_size, action_size, action_parameter_size):
    """Init mirroring nn.Linear defaults (uniform +/- 1/sqrt(fan_in)).

    Weights stored as [in_features, out_features]; biases as 1-D [out_features].
    The frozen zero-init passthrough layer is unused in forward and omitted.
    """
    del action_size  # unused by forward
    ks = jax.random.split(key, 6)

    def lin(kw, kb, fan_in, fan_out):
        bound = 1.0 / jnp.sqrt(float(fan_in))
        w = jax.random.uniform(kw, (fan_in, fan_out), jnp.float32, -bound, bound)
        b = jax.random.uniform(kb, (fan_out,), jnp.float32, -bound, bound)
        return w, b

    w1, b1 = lin(ks[0], ks[1], state_size, NEURON)
    w2, b2 = lin(ks[2], ks[3], NEURON, NEURON)
    w3, b3 = lin(ks[4], ks[5], NEURON, action_parameter_size)
    return (w1, b1, w2, b2, w3, b3)


def _reference_forward(state, params):
    """Pure-JAX reference mirroring the kernel's bf16-matmul / f32-accumulate numerics."""
    w1, b1, w2, b2, w3, b3 = params
    bf = jnp.bfloat16
    h1 = jnp.maximum(
        jnp.dot(state.astype(bf), w1.astype(bf),
                preferred_element_type=jnp.float32) + b1, 0.0)
    h2 = jnp.maximum(
        jnp.dot(h1.astype(bf), w2.astype(bf),
                preferred_element_type=jnp.float32) + b2, 0.0)
    o = jnp.dot(h2.astype(bf), w3.astype(bf),
                preferred_element_type=jnp.float32) + b3
    return jnp.tanh(o)


if __name__ == "__main__":
    key = jax.random.PRNGKey(0)
    k_state, k_params = jax.random.split(key)

    batch = 8
    state_size = 32
    action_size = 4              # unused in forward
    action_parameter_size = 16

    state = jax.random.normal(k_state, (batch, state_size), jnp.float32)
    params = init_param_actor(k_params, state_size, action_size,
                              action_parameter_size)

    out = param_actor_forward(state, params)
    out = jax.block_until_ready(out)

    ref = _reference_forward(state, params)
    assert out.shape == (batch, action_parameter_size)
    assert jnp.allclose(out, ref, atol=1e-3, rtol=1e-3), "mismatch vs JAX reference"

    print("KERNEL_OK")
</pallas_src>

<mosaic_0001>
module attributes {stable_mosaic.version = 11 : i64} {
  func.func @_param_actor_kernel(%arg0: i32, %arg1: memref<8x32xf32, #tpu.memory_space<vmem>>, %arg2: memref<32x128xbf16, #tpu.memory_space<vmem>>, %arg3: memref<128x128xbf16, #tpu.memory_space<vmem>>, %arg4: memref<128x128xbf16, #tpu.memory_space<vmem>>, %arg5: memref<3x128xf32, #tpu.memory_space<vmem>>, %arg6: memref<8x128xf32, #tpu.memory_space<vmem>>) attributes {dimension_semantics = [#tpu.dimension_semantics<parallel>], iteration_bounds = array<i64: 1>, scalar_prefetch = 0 : i64, scratch_operands = 0 : i64, tpu.core_type = #tpu.core_type<tc>, window_params = [{transform_indices = @transform_0, window_bounds = array<i64: 8, 32>}, {pipeline_mode = #tpu.pipeline_mode<synchronous>, transform_indices = @transform_1, window_bounds = array<i64: 32, 128>}, {pipeline_mode = #tpu.pipeline_mode<synchronous>, transform_indices = @transform_2, window_bounds = array<i64: 128, 128>}, {pipeline_mode = #tpu.pipeline_mode<synchronous>, transform_indices = @transform_3, window_bounds = array<i64: 128, 128>}, {pipeline_mode = #tpu.pipeline_mode<synchronous>, transform_indices = @transform_4, window_bounds = array<i64: 3, 128>}, {transform_indices = @transform_5, window_bounds = array<i64: 8, 128>}]} {
    %c0 = arith.constant 0 : index
    %c0_0 = arith.constant 0 : index
    %0 = vector.load %arg1[%c0, %c0_0] : memref<8x32xf32, #tpu.memory_space<vmem>>, vector<8x32xf32>
    %1 = arith.truncf %0 : vector<8x32xf32> to vector<8x32xbf16>
    %c0_1 = arith.constant 0 : index
    %c0_2 = arith.constant 0 : index
    %2 = vector.load %arg2[%c0_1, %c0_2] : memref<32x128xbf16, #tpu.memory_space<vmem>>, vector<32x128xbf16>
    %cst = arith.constant dense<0.000000e+00> : vector<8x128xf32>
    %3 = tpu.matmul %1, %2, %cst {dimension_numbers = #tpu.dot_dimension_numbers<[1], [0], [0], [1], [0, 0, 1, 1], [], []>} : vector<8x32xbf16>, vector<32x128xbf16>, vector<8x128xf32> -> vector<8x128xf32>
    %c0_3 = arith.constant 0 : index
    %c0_4 = arith.constant 0 : index
    %4 = vector.load %arg5[%c0_3, %c0_4] : memref<3x128xf32, #tpu.memory_space<vmem>>, vector<1x128xf32>
    %5 = vector.broadcast %4 : vector<1x128xf32> to vector<8x128xf32>
    %6 = arith.addf %3, %5 : vector<8x128xf32>
    %cst_5 = arith.constant 0.000000e+00 : f32
    %7 = vector.broadcast %cst_5 : f32 to vector<8x128xf32>
    %8 = arith.maximumf %6, %7 : vector<8x128xf32>
    %9 = arith.truncf %8 : vector<8x128xf32> to vector<8x128xbf16>
    %c0_6 = arith.constant 0 : index
    %c0_7 = arith.constant 0 : index
    %10 = vector.load %arg3[%c0_6, %c0_7] : memref<128x128xbf16, #tpu.memory_space<vmem>>, vector<128x128xbf16>
    %cst_8 = arith.constant dense<0.000000e+00> : vector<8x128xf32>
    %11 = tpu.matmul %9, %10, %cst_8 {dimension_numbers = #tpu.dot_dimension_numbers<[1], [0], [0], [1], [0, 0, 1, 1], [], []>} : vector<8x128xbf16>, vector<128x128xbf16>, vector<8x128xf32> -> vector<8x128xf32>
    %c1 = arith.constant 1 : index
    %c0_9 = arith.constant 0 : index
    %12 = vector.load %arg5[%c1, %c0_9] : memref<3x128xf32, #tpu.memory_space<vmem>>, vector<1x128xf32>
    %13 = vector.broadcast %12 : vector<1x128xf32> to vector<8x128xf32>
    %14 = arith.addf %11, %13 : vector<8x128xf32>
    %cst_10 = arith.constant 0.000000e+00 : f32
    %15 = vector.broadcast %cst_10 : f32 to vector<8x128xf32>
    %16 = arith.maximumf %14, %15 : vector<8x128xf32>
    %17 = arith.truncf %16 : vector<8x128xf32> to vector<8x128xbf16>
    %c0_11 = arith.constant 0 : index
    %c0_12 = arith.constant 0 : index
    %18 = vector.load %arg4[%c0_11, %c0_12] : memref<128x128xbf16, #tpu.memory_space<vmem>>, vector<128x128xbf16>
    %cst_13 = arith.constant dense<0.000000e+00> : vector<8x128xf32>
    %19 = tpu.matmul %17, %18, %cst_13 {dimension_numbers = #tpu.dot_dimension_numbers<[1], [0], [0], [1], [0, 0, 1, 1], [], []>} : vector<8x128xbf16>, vector<128x128xbf16>, vector<8x128xf32> -> vector<8x128xf32>
    %c2 = arith.constant 2 : index
    %c0_14 = arith.constant 0 : index
    %20 = vector.load %arg5[%c2, %c0_14] : memref<3x128xf32, #tpu.memory_space<vmem>>, vector<1x128xf32>
    %21 = vector.broadcast %20 : vector<1x128xf32> to vector<8x128xf32>
    %22 = arith.addf %19, %21 : vector<8x128xf32>
    %23 = math.tanh %22 : vector<8x128xf32>
    %c0_15 = arith.constant 0 : index
    %c0_16 = arith.constant 0 : index
    %24 = vector.load %arg6[%c0_15, %c0_16] : memref<8x128xf32, #tpu.memory_space<vmem>>, vector<8x128xf32>
    tpu.vector_store %arg6[%c0_15, %c0_16], %23 {strides = array<i32>} : memref<8x128xf32, #tpu.memory_space<vmem>>, vector<8x128xf32>,
    return
  }
  func.func @transform_0(%arg0: i32) -> (i32, i32) {
    %c0_i32 = arith.constant 0 : i32
    %c0_i32_0 = arith.constant 0 : i32
    return %arg0, %c0_i32 : i32, i32
  }
  func.func @transform_1(%arg0: i32) -> (i32, i32) {
    %c0_i32 = arith.constant 0 : i32
    %c0_i32_0 = arith.constant 0 : i32
    %c0_i32_1 = arith.constant 0 : i32
    return %c0_i32, %c0_i32_0 : i32, i32
  }
  func.func @transform_2(%arg0: i32) -> (i32, i32) {
    %c0_i32 = arith.constant 0 : i32
    %c0_i32_0 = arith.constant 0 : i32
    %c0_i32_1 = arith.constant 0 : i32
    return %c0_i32, %c0_i32_0 : i32, i32
  }
  func.func @transform_3(%arg0: i32) -> (i32, i32) {
    %c0_i32 = arith.constant 0 : i32
    %c0_i32_0 = arith.constant 0 : i32
    %c0_i32_1 = arith.constant 0 : i32
    return %c0_i32, %c0_i32_0 : i32, i32
  }
  func.func @transform_4(%arg0: i32) -> (i32, i32) {
    %c0_i32 = arith.constant 0 : i32
    %c0_i32_0 = arith.constant 0 : i32
    %c0_i32_1 = arith.constant 0 : i32
    return %c0_i32, %c0_i32_0 : i32, i32
  }
  func.func @transform_5(%arg0: i32) -> (i32, i32) {
    %c0_i32 = arith.constant 0 : i32
    %c0_i32_0 = arith.constant 0 : i32
    return %arg0, %c0_i32 : i32, i32
  }
}

</mosaic_0001>

<llo_original>
// kernel: tpu_custom_call.1
$region0: #{tpu_custom_call.1}
  #allocation0 [shape = 'u32[]', space=smem, size = 0x4, offset = 0x4, fixed_abs, tag = 'smem constant byte address 0x4 - core index']
  #allocation1 [shape = 'u32[144,128]{1,0:T(1,128)}', space=vmem, size = 0x12000, scoped, tag = 'internal scratch']
  %s0 = inlined_call_operand.hbm [shape: f32[8,32], index: 0, kind: input, shape index: {}]
  %s1 = inlined_call_operand.hbm [shape: bf16[32,128], index: 1, kind: input, shape index: {}]
  %s2 = inlined_call_operand.hbm [shape: bf16[128,128], index: 2, kind: input, shape index: {}]
  %s3 = inlined_call_operand.hbm [shape: bf16[128,128], index: 3, kind: input, shape index: {}]
  %s4 = inlined_call_operand.vmem [shape: f32[3,128], index: 4, kind: input, shape index: {}]
  %s5 = inlined_call_operand.hbm [shape: f32[8,128], index: 5, kind: output, shape index: {}]
  %s6 = sld [smem:[#allocation0]]
  $region46: #{tpu_custom_call.1} parent=0
    _
  %s8 = ssub.s32 1, %s6
  %s9 = scalar_select 0, %s8, %s6
  $region1: #{tpu_custom_call.1} parent=0
    #allocation2 [shape = 'u8[4096]{0}', space=vmem, size = 0x1000, scoped, tag = 'input window, operand 0, single buffered']
    #allocation3 [shape = 's32[1]{0}', space=sflag, size = 0x4, scoped, tag = 'scoped memory for tpu_custom_call.1']
    #allocation4 [shape = 's32[1]{0}', space=sflag, size = 0x4, scoped, tag = 'scoped memory for tpu_custom_call.1']
    #allocation5 [shape = 'u8[8192]{0}', space=vmem, size = 0x2000, scoped, tag = 'input window, operand 1, single buffered']
    #allocation6 [shape = 's32[1]{0}', space=sflag, size = 0x4, scoped, tag = 'scoped memory for tpu_custom_call.1']
    #allocation7 [shape = 'u8[32768]{0}', space=vmem, size = 0x8000, scoped, tag = 'input window, operand 2, single buffered']
    #allocation8 [shape = 'u8[32768]{0}', space=vmem, size = 0x8000, scoped, tag = 'input window, operand 3, single buffered']
    #allocation9 [shape = 's32[1]{0}', space=sflag, size = 0x4, scoped, tag = 'scoped memory for tpu_custom_call.1']
    #allocation10 [shape = 'u8[4096]{0}', space=vmem, size = 0x1000, scoped, tag = 'output window, operand 0, single buffered']
    %10 = vsyncpa [#allocation3], 0
    %11 = vsyncpa [#allocation6], 0
    %12 = vsyncpa [#allocation9], 0
    %13 = vsyncpa [#allocation4], 0
    // Predicated region
    $region2: #{tpu_custom_call.1} parent=1 // pred_check
      _
    $region3: #{tpu_custom_call.1} parent=1 // pred_check_branch
      %15 = sbr.rel (0) target = $region5
    $region4: #{tpu_custom_call.1} parent=1 // pred_region
      %s17 = ssub.s32 128, 128
      %18 = vsyncadd [#allocation3], %s17
      %s20 = sshll.u32 [#allocation2], 4
      %s21 = int_to_ptr.vmem [resolvable:$true] %s20
      %23 = dma.hbm_to_vmem [thread:$0]  %s0, 128, %s21, [#allocation3]
    $region5: #{tpu_custom_call.1} parent=1 // pred_fallthru
      _
    // Predicated region
    $region6: #{tpu_custom_call.1} parent=1 // pred_check
      _
    $region7: #{tpu_custom_call.1} parent=1 // pred_check_branch
      %25 = sbr.rel (0) target = $region9
    $region8: #{tpu_custom_call.1} parent=1 // pred_region
      %s27 = ssub.s32 256, 256
      %28 = vsyncadd [#allocation6], %s27
      %s29 = sshll.u32 [#allocation5], 4
      %s30 = int_to_ptr.vmem [resolvable:$true] %s29
      %35 = dma.hbm_to_vmem [thread:$0]  %s1, 256, %s30, [#allocation6], 64, 64, 4
    $region9: #{tpu_custom_call.1} parent=1 // pred_fallthru
      _
    // Predicated region
    $region10: #{tpu_custom_call.1} parent=1 // pred_check
      _
    $region11: #{tpu_custom_call.1} parent=1 // pred_check_branch
      %37 = sbr.rel (0) target = $region13
    $region12: #{tpu_custom_call.1} parent=1 // pred_region
      %s39 = ssub.s32 1024, 1024
      %40 = vsyncadd [#allocation6], %s39
      %s41 = sshll.u32 [#allocation7], 4
      %s42 = int_to_ptr.vmem [resolvable:$true] %s41
      %47 = dma.hbm_to_vmem [thread:$0]  %s2, 1024, %s42, [#allocation6], 64, 64, 4
    $region13: #{tpu_custom_call.1} parent=1 // pred_fallthru
      _
    // Predicated region
    $region14: #{tpu_custom_call.1} parent=1 // pred_check
      _
    $region15: #{tpu_custom_call.1} parent=1 // pred_check_branch
      %49 = sbr.rel (0) target = $region17
    $region16: #{tpu_custom_call.1} parent=1 // pred_region
      %s51 = ssub.s32 1024, 1024
      %52 = vsyncadd [#allocation9], %s51
      %s53 = sshll.u32 [#allocation8], 4
      %s54 = int_to_ptr.vmem [resolvable:$true] %s53
      %59 = dma.hbm_to_vmem [thread:$0]  %s3, 1024, %s54, [#allocation9], 64, 64, 4
    $region17: #{tpu_custom_call.1} parent=1 // pred_fallthru
      _
    // Predicated region
    $region18: #{tpu_custom_call.1} parent=1 // pred_check
      _
    $region19: #{tpu_custom_call.1} parent=1 // pred_check_branch
      %61 = sbr.rel (0) target = $region21
    $region20: #{tpu_custom_call.1} parent=1 // pred_region
      _
    $region21: #{tpu_custom_call.1} parent=1 // pred_fallthru
      _
    // Predicated region
    $region22: #{tpu_custom_call.1} parent=1 // pred_check
      _
    $region23: #{tpu_custom_call.1} parent=1 // pred_check_branch
      %63 = sbr.rel (0) target = $region25
    $region24: #{tpu_custom_call.1} parent=1 // pred_region
      %64 = dma.done [#allocation3], 128
    $region25: #{tpu_custom_call.1} parent=1 // pred_fallthru
      _
    // Predicated region
    $region26: #{tpu_custom_call.1} parent=1 // pred_check
      _
    $region27: #{tpu_custom_call.1} parent=1 // pred_check_branch
      %66 = sbr.rel (0) target = $region29
    $region28: #{tpu_custom_call.1} parent=1 // pred_region
      %67 = dma.done [#allocation6], 256
    $region29: #{tpu_custom_call.1} parent=1 // pred_fallthru
      _
    // Predicated region
    $region30: #{tpu_custom_call.1} parent=1 // pred_check
      _
    $region31: #{tpu_custom_call.1} parent=1 // pred_check_branch
      %69 = sbr.rel (0) target = $region33
    $region32: #{tpu_custom_call.1} parent=1 // pred_region
      %70 = dma.done [#allocation6], 1024
    $region33: #{tpu_custom_call.1} parent=1 // pred_fallthru
      _
    // Predicated region
    $region34: #{tpu_custom_call.1} parent=1 // pred_check
      _
    $region35: #{tpu_custom_call.1} parent=1 // pred_check_branch
      %72 = sbr.rel (0) target = $region37
    $region36: #{tpu_custom_call.1} parent=1 // pred_region
      %73 = dma.done [#allocation9], 1024
    $region37: #{tpu_custom_call.1} parent=1 // pred_fallthru
      _
    %v75 = vld [vmem:[#allocation2] sm:$0xff]
    %v76 = vpack.c.bf16 %v75, %v75
    %v77 = vld [vmem:[#allocation5] sm:$0xf]
    %v78 = vld [vmem:[#allocation5 + $0x4] sm:$0xf]
    %v79 = vld [vmem:[#allocation5 + $0x8] sm:$0xf]
    %v80 = vld [vmem:[#allocation5 + $0xc] sm:$0xf]
    %v81 = vld [vmem:[%s4] sm:$0x1]
    %v82 = vlaneseq
    %v83 = vshrl.u32 %v82, 7
    %v84 = vsub.s32 0, %v83
    %v85 = vrot.slane %v81, %v84
    %v90 = vunpack.c.l.b16 %v77
    %v91 = vunpack.c.l.b16 %v78
    %v92 = vunpack.c.l.b16 %v79
    %v93 = vunpack.c.l.b16 %v80
    %v94 = vpack.c.b16 %v91, %v90
    %v95 = vpack.c.b16 %v93, %v92
    %vm98 = vcmask 261120
    %v100 = vsel %vm98, %v76, 0
    %102 = vmatprep.subr.bf16.mxu0 0
    %103 = vmatpush1.bf16.msra.mxu0 0
    %104 = vmatprep.subr.bf16.mxu0 0
    %105 = vmatpush1.bf16.msra.mxu0 0
    %106 = vmatprep.subr.bf16.mxu0 0
    %107 = vmatpush1.bf16.msra.mxu0 0
    %108 = vmatprep.subr.bf16.mxu0 0
    %109 = vmatpush1.bf16.msra.mxu0 0
    %110 = vmatprep.subr.bf16.mxu0 0
    %111 = vmatpush1.bf16.msra.mxu0 0
    %112 = vmatprep.subr.bf16.mxu0 0
    %113 = vmatpush1.bf16.msra.mxu0 0
    %114 = vmatprep.subr.bf16.mxu0 0
    %115 = vmatpush1.bf16.msra.mxu0 %v95
    %116 = vmatprep.subr.bf16.mxu0 0
    %117 = vmatpush1.bf16.msra.mxu0 %v94
    %118 = vmatprep.subr.bf16.mxu0 0
    %119 = vmatpush2.bf16.msra.mxu0 0
    %120 = vmatprep.subr.bf16.mxu0 0
    %121 = vmatpush2.bf16.msra.mxu0 0
    %122 = vmatprep.subr.bf16.mxu0 0
    %123 = vmatpush2.bf16.msra.mxu0 0
    %124 = vmatprep.subr.bf16.mxu0 0
    %125 = vmatpush2.bf16.msra.mxu0 0
    %126 = vmatprep.subr.bf16.mxu0 0
    %127 = vmatpush2.bf16.msra.mxu0 0
    %128 = vmatprep.subr.bf16.mxu0 0
    %129 = vmatpush2.bf16.msra.mxu0 0
    %130 = vmatprep.subr.bf16.mxu0 0
    %131 = vmatpush2.bf16.msra.mxu0 0
    %132 = vmatprep.subr.bf16.mxu0 0
    %133 = vmatpush2.bf16.msra.mxu0 0
    %134 = vmatprep.mubr.bf16.mxu0 0
    %135 = vmatmul.mubr.bf16.gmra.mxu0 %v100
    %v136 = vpop.f32.mrf.mxu0
    %v137 = vadd.f32 %v85, %v136
    %v138 = vpop.f32.mrf.mxu0
    %v139 = vpop.f32.mrf.mxu0
    %v140 = vpop.f32.mrf.mxu0
    %141 = vdwg.mxu0
    %v142 = vmax.f32 %v137, 0.0
    %v143 = vpack.c.bf16 %v142, %v142
    %v144 = vld [vmem:[#allocation7] sm:$0xf]
    %v145 = vld [vmem:[#allocation7 + $0x4] sm:$0xf]
    %v146 = vld [vmem:[#allocation7 + $0x8] sm:$0xf]
    %v147 = vld [vmem:[#allocation7 + $0xc] sm:$0xf]
    %v148 = vld [vmem:[#allocation7 + $0x10] sm:$0xf]
    %v149 = vld [vmem:[#allocation7 + $0x14] sm:$0xf]
    %v150 = vld [vmem:[#allocation7 + $0x18] sm:$0xf]
    %v151 = vld [vmem:[#allocation7 + $0x1c] sm:$0xf]
    %v152 = vld [vmem:[#allocation7 + $0x20] sm:$0xf]
    %v153 = vld [vmem:[#allocation7 + $0x24] sm:$0xf]
    %v154 = vld [vmem:[#allocation7 + $0x28] sm:$0xf]
    %v155 = vld [vmem:[#allocation7 + $0x2c] sm:$0xf]
    %v156 = vld [vmem:[#allocation7 + $0x30] sm:$0xf]
    %v157 = vld [vmem:[#allocation7 + $0x34] sm:$0xf]
    %v158 = vld [vmem:[#allocation7 + $0x38] sm:$0xf]
    %v159 = vld [vmem:[#allocation7 + $0x3c] sm:$0xf]
    %v160 = vld [vmem:[%s4 + $0x1] sm:$0x1]
    %v161 = vlaneseq
    %v162 = vshrl.u32 %v161, 7
    %v163 = vsub.s32 0, %v162
    %v164 = vrot.slane %v160, %v163
    %v181 = vunpack.c.l.b16 %v144
    %v182 = vunpack.c.l.b16 %v145
    %v183 = vunpack.c.l.b16 %v146
    %v184 = vunpack.c.l.b16 %v147
    %v185 = vunpack.c.l.b16 %v148
    %v186 = vunpack.c.l.b16 %v149
    %v187 = vunpack.c.l.b16 %v150
    %v188 = vunpack.c.l.b16 %v151
    %v189 = vunpack.c.l.b16 %v152
    %v190 = vunpack.c.l.b16 %v153
    %v191 = vunpack.c.l.b16 %v154
    %v192 = vunpack.c.l.b16 %v155
    %v193 = vunpack.c.l.b16 %v156
    %v194 = vunpack.c.l.b16 %v157
    %v195 = vunpack.c.l.b16 %v158
    %v196 = vunpack.c.l.b16 %v159
    %v197 = vpack.c.b16 %v182, %v181
    %v198 = vpack.c.b16 %v184, %v183
    %v199 = vpack.c.b16 %v186, %v185
    %v200 = vpack.c.b16 %v188, %v187
    %v201 = vpack.c.b16 %v190, %v189
    %v202 = vpack.c.b16 %v192, %v191
    %v203 = vpack.c.b16 %v194, %v193
    %v204 = vpack.c.b16 %v196, %v195
    %213 = vmatprep.subr.bf16.mxu0 0
    %214 = vmatpush1.bf16.msra.mxu0 %v204
    %215 = vmatprep.subr.bf16.mxu0 0
    %216 = vmatpush1.bf16.msra.mxu0 %v203
    %217 = vmatprep.subr.bf16.mxu0 0
    %218 = vmatpush1.bf16.msra.mxu0 %v202
    %219 = vmatprep.subr.bf16.mxu0 0
    %220 = vmatpush1.bf16.msra.mxu0 %v201
    %221 = vmatprep.subr.bf16.mxu0 0
    %222 = vmatpush1.bf16.msra.mxu0 %v200
    %223 = vmatprep.subr.bf16.mxu0 0
    %224 = vmatpush1.bf16.msra.mxu0 %v199
    %225 = vmatprep.subr.bf16.mxu0 0
    %226 = vmatpush1.bf16.msra.mxu0 %v198
    %227 = vmatprep.subr.bf16.mxu0 0
    %228 = vmatpush1.bf16.msra.mxu0 %v197
    %229 = vmatprep.subr.bf16.mxu0 0
    %230 = vmatpush2.bf16.msra.mxu0 0
    %231 = vmatprep.subr.bf16.mxu0 0
    %232 = vmatpush2.bf16.msra.mxu0 0
    %233 = vmatprep.subr.bf16.mxu0 0
    %234 = vmatpush2.bf16.msra.mxu0 0
    %235 = vmatprep.subr.bf16.mxu0 0
    %236 = vmatpush2.bf16.msra.mxu0 0
    %237 = vmatprep.subr.bf16.mxu0 0
    %238 = vmatpush2.bf16.msra.mxu0 0
    %239 = vmatprep.subr.bf16.mxu0 0
    %240 = vmatpush2.bf16.msra.mxu0 0
    %241 = vmatprep.subr.bf16.mxu0 0
    %242 = vmatpush2.bf16.msra.mxu0 0
    %243 = vmatprep.subr.bf16.mxu0 0
    %244 = vmatpush2.bf16.msra.mxu0 0
    %245 = vmatprep.mubr.bf16.mxu0 0
    %246 = vmatmul.mubr.bf16.gmra.mxu0 %v143
    %v247 = vpop.f32.mrf.mxu0
    %v248 = vadd.f32 %v164, %v247
    %v249 = vpop.f32.mrf.mxu0
    %v250 = vpop.f32.mrf.mxu0
    %v251 = vpop.f32.mrf.mxu0
    %252 = vdwg.mxu0
    %v253 = vmax.f32 %v248, 0.0
    %v254 = vpack.c.bf16 %v253, %v253
    %v255 = vld [vmem:[#allocation8] sm:$0xf]
    %v256 = vld [vmem:[#allocation8 + $0x4] sm:$0xf]
    %v257 = vld [vmem:[#allocation8 + $0x8] sm:$0xf]
    %v258 = vld [vmem:[#allocation8 + $0xc] sm:$0xf]
    %v259 = vld [vmem:[#allocation8 + $0x10] sm:$0xf]
    %v260 = vld [vmem:[#allocation8 + $0x14] sm:$0xf]
    %v261 = vld [vmem:[#allocation8 + $0x18] sm:$0xf]
    %v262 = vld [vmem:[#allocation8 + $0x1c] sm:$0xf]
    %v263 = vld [vmem:[#allocation8 + $0x20] sm:$0xf]
    %v264 = vld [vmem:[#allocation8 + $0x24] sm:$0xf]
    %v265 = vld [vmem:[#allocation8 + $0x28] sm:$0xf]
    %v266 = vld [vmem:[#allocation8 + $0x2c] sm:$0xf]
    %v267 = vld [vmem:[#allocation8 + $0x30] sm:$0xf]
    %v268 = vld [vmem:[#allocation8 + $0x34] sm:$0xf]
    %v269 = vld [vmem:[#allocation8 + $0x38] sm:$0xf]
    %v270 = vld [vmem:[#allocation8 + $0x3c] sm:$0xf]
    %v271 = vld [vmem:[%s4 + $0x2] sm:$0x1]
    %v272 = vlaneseq
    %v273 = vshrl.u32 %v272, 7
    %v274 = vsub.s32 0, %v273
    %v275 = vrot.slane %v271, %v274
    %v292 = vunpack.c.l.b16 %v255
    %v293 = vunpack.c.l.b16 %v256
    %v294 = vunpack.c.l.b16 %v257
    %v295 = vunpack.c.l.b16 %v258
    %v296 = vunpack.c.l.b16 %v259
    %v297 = vunpack.c.l.b16 %v260
    %v298 = vunpack.c.l.b16 %v261
    %v299 = vunpack.c.l.b16 %v262
    %v300 = vunpack.c.l.b16 %v263
    %v301 = vunpack.c.l.b16 %v264
    %v302 = vunpack.c.l.b16 %v265
    %v303 = vunpack.c.l.b16 %v266
    %v304 = vunpack.c.l.b16 %v267
    %v305 = vunpack.c.l.b16 %v268
    %v306 = vunpack.c.l.b16 %v269
    %v307 = vunpack.c.l.b16 %v270
    %v308 = vpack.c.b16 %v293, %v292
    %v309 = vpack.c.b16 %v295, %v294
    %v310 = vpack.c.b16 %v297, %v296
    %v311 = vpack.c.b16 %v299, %v298
    %v312 = vpack.c.b16 %v301, %v300
    %v313 = vpack.c.b16 %v303, %v302
    %v314 = vpack.c.b16 %v305, %v304
    %v315 = vpack.c.b16 %v307, %v306
    %324 = vmatprep.subr.bf16.mxu0 0
    %325 = vmatpush1.bf16.msra.mxu0 %v315
    %326 = vmatprep.subr.bf16.mxu0 0
    %327 = vmatpush1.bf16.msra.mxu0 %v314
    %328 = vmatprep.subr.bf16.mxu0 0
    %329 = vmatpush1.bf16.msra.mxu0 %v313
    %330 = vmatprep.subr.bf16.mxu0 0
    %331 = vmatpush1.bf16.msra.mxu0 %v312
    %332 = vmatprep.subr.bf16.mxu0 0
    %333 = vmatpush1.bf16.msra.mxu0 %v311
    %334 = vmatprep.subr.bf16.mxu0 0
    %335 = vmatpush1.bf16.msra.mxu0 %v310
    %336 = vmatprep.subr.bf16.mxu0 0
    %337 = vmatpush1.bf16.msra.mxu0 %v309
    %338 = vmatprep.subr.bf16.mxu0 0
    %339 = vmatpush1.bf16.msra.mxu0 %v308
    %340 = vmatprep.subr.bf16.mxu0 0
    %341 = vmatpush2.bf16.msra.mxu0 0
    %342 = vmatprep.subr.bf16.mxu0 0
    %343 = vmatpush2.bf16.msra.mxu0 0
    %344 = vmatprep.subr.bf16.mxu0 0
    %345 = vmatpush2.bf16.msra.mxu0 0
    %346 = vmatprep.subr.bf16.mxu0 0
    %347 = vmatpush2.bf16.msra.mxu0 0
    %348 = vmatprep.subr.bf16.mxu0 0
    %349 = vmatpush2.bf16.msra.mxu0 0
    %350 = vmatprep.subr.bf16.mxu0 0
    %351 = vmatpush2.bf16.msra.mxu0 0
    %352 = vmatprep.subr.bf16.mxu0 0
    %353 = vmatpush2.bf16.msra.mxu0 0
    %354 = vmatprep.subr.bf16.mxu0 0
    %355 = vmatpush2.bf16.msra.mxu0 0
    %356 = vmatprep.mubr.bf16.mxu0 0
    %357 = vmatmul.mubr.bf16.gmra.mxu0 %v254
    %v358 = vpop.f32.mrf.mxu0
    %v359 = vadd.f32 %v275, %v358
    %v360 = vpop.f32.mrf.mxu0
    %v361 = vpop.f32.mrf.mxu0
    %v362 = vpop.f32.mrf.mxu0
    %363 = vdwg.mxu0
    %v364 = vtanh.pop %v359
    %365 = vst [vmem:[#allocation10] sm:$0xff] %v364
    // Predicated region
    $region38: #{tpu_custom_call.1} parent=1 // pred_check
      _
    $region39: #{tpu_custom_call.1} parent=1 // pred_check_branch
      %367 = sbr.rel (0) target = $region41
    $region40: #{tpu_custom_call.1} parent=1 // pred_region
      %s369 = ssub.s32 128, 128
      %370 = vsyncadd [#allocation4], %s369
      %s372 = sshll.u32 [#allocation10], 4
      %s373 = int_to_ptr.vmem [resolvable:$true] %s372
      %375 = dma.vmem_to_hbm [thread:$0]  %s373, 128, %s5, [#allocation4]
    $region41: #{tpu_custom_call.1} parent=1 // pred_fallthru
      _
    // Predicated region
    $region42: #{tpu_custom_call.1} parent=1 // pred_check
      _
    $region43: #{tpu_custom_call.1} parent=1 // pred_check_branch
      %377 = sbr.rel (0) target = $region45
    $region44: #{tpu_custom_call.1} parent=1 // pred_region
      %378 = dma.done [#allocation4], 128
    $region45: #{tpu_custom_call.1} parent=1 // pred_fallthru
      _
    %379 = vsyncpa [#allocation3], 1
    %380 = vsyncpa [#allocation6], 1
    %381 = vsyncpa [#allocation9], 1
    %382 = vsyncpa [#allocation4], 1

</llo_original>
